<compile_context>
chip_gen: v7x
topology: tpu7x:2x2x1
jax: 0.10.0
libtpu: 0.0.40
codegen_flags: <defaults>
</compile_context>

<pallas_src>
import functools

import numpy as np
import jax
import jax.numpy as jnp
from jax import lax
from jax.experimental import pallas as pl
from jax.experimental.pallas import tpu as pltpu


def _round_up(a, b):
    return ((a + b - 1) // b) * b


# --------------------------------------------------------------------------- #
# Kernel 1: node-blocked fused projection GEMM                                 #
# --------------------------------------------------------------------------- #
def _node_proj_kernel(x_ref, w_ref, gather_ref, strg_ref, skip_ref, *, HFp):
    res = jnp.dot(x_ref[...], w_ref[...], preferred_element_type=jnp.float32)
    gather_ref[...] = res[:, :2 * HFp]           # [proj | s_src]  (resident gather slab)
    strg_ref[...] = res[:, 2 * HFp:3 * HFp]      # s_trg (per-head, lane-broadcast)
    skip_ref[...] = res[:, 3 * HFp:4 * HFp]      # skip branch


def _node_projection(x_pad, w_all, *, TN, HFp):
    N_pad, Fin_p = x_pad.shape
    vmem = 8 * (TN * Fin_p + Fin_p * 4 * HFp + TN * 4 * HFp) + (8 << 20)
    return pl.pallas_call(
        functools.partial(_node_proj_kernel, HFp=HFp),
        grid=(N_pad // TN,),
        in_specs=[pl.BlockSpec((TN, Fin_p), lambda i: (i, 0)),
                  pl.BlockSpec((Fin_p, 4 * HFp), lambda i: (0, 0))],
        out_specs=[pl.BlockSpec((TN, 2 * HFp), lambda i: (i, 0)),
                   pl.BlockSpec((TN, HFp), lambda i: (i, 0)),
                   pl.BlockSpec((TN, HFp), lambda i: (i, 0))],
        out_shape=(jax.ShapeDtypeStruct((N_pad, 2 * HFp), jnp.float32),
                   jax.ShapeDtypeStruct((N_pad, HFp), jnp.float32),
                   jax.ShapeDtypeStruct((N_pad, HFp), jnp.float32)),
        compiler_params=pltpu.CompilerParams(
            dimension_semantics=("parallel",),
            vmem_limit_bytes=int(min(max(vmem, 16 << 20), 100 << 20))),
    )(x_pad, w_all)


# --------------------------------------------------------------------------- #
# Kernel 2: edge aggregation (neighborhood softmax) + skip / bias / ELU        #
# --------------------------------------------------------------------------- #
def _gat_edge_kernel(cbase_ref, nchunks_ref, srcids_ref,
                     nodes_ref, strg_ref, skip_ref, bias_ref, mrow_ref,
                     tlr_ref, tlc_ref,
                     o_ref, gath_scr, acc_scr, *, NB, TE, HFp):
    """Grid: (node_block [parallel], edge_chunk [arbitrary]).

    cbase/nchunks/srcids : SMEM scalar-prefetch (per-block chunk table + src ids)
    nodes_ref            : VMEM (N_pad, 2*HFp) resident [proj | s_src]
    strg_ref, skip_ref   : VMEM (NB, HFp) node-block slabs
    tlr_ref / tlc_ref    : VMEM (1,1,TE)/(1,TE,1) local target ids (NB = dummy)
    acc_scr              : VMEM (NB, 2*HFp) accumulator [numerator | denominator]
    """
    f32 = jnp.float32
    nb = pl.program_id(0)
    c = pl.program_id(1)

    @pl.when(c == 0)
    def _init():
        acc_scr[...] = jnp.zeros_like(acc_scr)

    @pl.when(c < nchunks_ref[nb])
    def _process():
        chunk = cbase_ref[nb] + c

        # ---- gather source-node rows into staging (unrolled x8, no RMW hazard) ----
        def gather8(j, carry):
            base = pl.multiple_of(j * 8, 8)
            for u in range(8):
                s = srcids_ref[chunk, base + u]
                gath_scr[pl.ds(base + u, 1), :] = nodes_ref[pl.ds(s, 1), :]
            return carry

        lax.fori_loop(0, TE // 8, gather8, 0)

        proj_src = gath_scr[:, :HFp]                        # (TE, HFp)
        s_src = gath_scr[:, HFp:]                           # (TE, HFp)

        tl_row = tlr_ref[0, :, :]                           # (1, TE)
        tl_col = tlc_ref[0, :, :]                           # (TE, 1)
        onehot_nt = (lax.broadcasted_iota(jnp.int32, (NB, TE), 0) == tl_row).astype(f32)
        onehot_tn = (lax.broadcasted_iota(jnp.int32, (TE, NB), 1) == tl_col).astype(f32)

        # per-edge target score via MXU (dummy edges -> all-zero one-hot row -> 0)
        s_trg_e = jnp.dot(onehot_tn, strg_ref[...], preferred_element_type=f32)
        score = s_src + s_trg_e
        score = jnp.where(score > 0, score, 0.2 * score)                 # LeakyReLU(0.2)
        # global-max shift (m >= every real edge score); the clamp only affects
        # padded lanes / dummy edges and keeps them bounded.
        w = jnp.exp(jnp.minimum(score - mrow_ref[...], 0.0))             # (TE, HFp), <= 1
        vals = jnp.concatenate([w * proj_src, w], axis=1)                # [num | den] per edge

        # segment-sum "scatter" via MXU into the per-node-block accumulator
        acc_scr[...] += jnp.dot(onehot_nt, vals, preferred_element_type=f32)

    @pl.when(c == pl.num_programs(1) - 1)
    def _finalize():
        num = acc_scr[:, :HFp]
        den = acc_scr[:, HFp:]
        out = num * pl.reciprocal(den + 1e-16)
        out = out + skip_ref[...] + bias_ref[...]
        # ELU(alpha=1) with clamped exp so the untaken branch never overflows.
        o_ref[...] = jnp.where(out > 0.0, out, jnp.exp(jnp.minimum(out, 0.0)) - 1.0)


# --------------------------------------------------------------------------- #
# Wrapper                                                                      #
# --------------------------------------------------------------------------- #
def gat_imp3_forward(x, edge_index, w_proj_t, w_skip_t, a_src, a_trg, bias,
                     *, node_block=128, edge_chunk=256):
    """x: (N, Fin) f32; edge_index: (2, E) int (row0=src, row1=trg);
    w_proj_t / w_skip_t: (Fin, H*Fout); a_src / a_trg: (H, Fout); bias: (H*Fout,).
    Returns (N, H*Fout) f32 (concat=True, eval-mode dropout)."""
    f32 = jnp.float32
    x = jnp.asarray(x, f32)
    N, Fin = x.shape
    H, Fout = a_src.shape
    HF = H * Fout
    E = int(edge_index.shape[1])

    HFp = _round_up(HF, 128)                       # lane-dense output width
    Fin_p = _round_up(Fin, 128)
    NB = _round_up(min(int(node_block), _round_up(N, 8)), 8)
    N_pad = _round_up(N, NB)
    nblocks = N_pad // NB
    TE = int(edge_chunk)
    assert TE % 8 == 0

    # ---- host-side graph preprocessing: CSR-group edges by target node block and
    #      pad each block's edge list to a multiple of TE with dummy edges ----------
    src_np = np.asarray(edge_index[0]).astype(np.int64)
    trg_np = np.asarray(edge_index[1]).astype(np.int64)
    order = np.argsort(trg_np, kind="stable")
    src_s, trg_s = src_np[order], trg_np[order]
    blk = trg_s // NB
    counts = np.bincount(blk, minlength=nblocks).astype(np.int64)
    nchunks = np.maximum((counts + TE - 1) // TE, 1)
    chunk_base = np.concatenate([[0], np.cumsum(nchunks)[:-1]]).astype(np.int64)
    estart = np.concatenate([[0], np.cumsum(counts)[:-1]]).astype(np.int64)
    C_total = int(nchunks.sum())
    MAXC = int(nchunks.max())

    src_layout = np.zeros((C_total, TE), dtype=np.int32)       # dummy src -> node 0
    trgl_layout = np.full((C_total, TE), NB, dtype=np.int32)   # NB == "no target" sentinel
    for b in range(nblocks):
        cnt = int(counts[b])
        if cnt == 0:
            continue
        nck, c0, e0 = int(nchunks[b]), int(chunk_base[b]), int(estart[b])
        seg_s = np.zeros((nck * TE,), np.int32)
        seg_t = np.full((nck * TE,), NB, np.int32)
        seg_s[:cnt] = src_s[e0:e0 + cnt]
        seg_t[:cnt] = trg_s[e0:e0 + cnt] - b * NB
        src_layout[c0:c0 + nck] = seg_s.reshape(nck, TE)
        trgl_layout[c0:c0 + nck] = seg_t.reshape(nck, TE)

    # ---- fused projection weights (per-head scores pre-broadcast across Fout lanes) ----
    head_of_col = np.arange(HF) // Fout
    blockmask = (head_of_col[:, None] == head_of_col[None, :]).astype(np.float32)
    b_src = np.asarray(a_src, np.float32).reshape(HF)[:, None] * blockmask    # (HF, HF)
    b_trg = np.asarray(a_trg, np.float32).reshape(HF)[:, None] * blockmask

    wp = jnp.asarray(w_proj_t, f32)
    if Fout == Fin:   # PyTorch adds the raw input to every head when dims match
        w_skip_eff = jnp.tile(jnp.eye(Fin, dtype=f32), (1, H))
    else:
        w_skip_eff = jnp.asarray(w_skip_t, f32)

    def pad_cols(m):  # (Fin, HF) -> (Fin_p, HFp)
        return jnp.zeros((Fin_p, HFp), f32).at[:Fin, :HF].set(m)

    w_all = jnp.concatenate([pad_cols(wp),
                             pad_cols(wp @ jnp.asarray(b_src)),
                             pad_cols(wp @ jnp.asarray(b_trg)),
                             pad_cols(w_skip_eff)], axis=1)                # (Fin_p, 4*HFp)
    x_pad = jnp.zeros((N_pad, Fin_p), f32).at[:N, :Fin].set(x)
    bias_row = jnp.zeros((1, HFp), f32).at[0, :HF].set(jnp.asarray(bias, f32).reshape(HF))

    # ---- kernel 1: blocked projection (x streamed through VMEM in node-row tiles) ----
    nodes_gather, strg_nodes, skip_nodes = _node_projection(x_pad, w_all, TN=NB, HFp=HFp)

    # ---- exact global softmax shift (same quantity as the reference's scores.max()) ----
    if E > 0:
        hcols = jnp.arange(H, dtype=jnp.int32) * Fout
        s_src_n = nodes_gather[:N, HFp + hcols]              # (N, H)
        s_trg_n = strg_nodes[:N, hcols]                      # (N, H)
        e_sc = (s_src_n[jnp.asarray(src_np, jnp.int32)]
                + s_trg_n[jnp.asarray(trg_np, jnp.int32)])
        e_sc = jnp.where(e_sc > 0, e_sc, 0.2 * e_sc)
        m_val = jnp.max(e_sc)
    else:
        m_val = jnp.asarray(0.0, f32)
    m_row = jnp.full((1, HFp), m_val, f32)

    # ---- kernel 2 ----
    cb_j = jnp.asarray(chunk_base, jnp.int32)
    nc_j = jnp.asarray(nchunks, jnp.int32)
    si_j = jnp.asarray(src_layout)
    tlr_j = jnp.asarray(trgl_layout).reshape(C_total, 1, TE)
    tlc_j = jnp.asarray(trgl_layout).reshape(C_total, TE, 1)

    vmem = 4 * (2 * N_pad * 2 * HFp + 8 * NB * HFp + TE * 2 * HFp + NB * 2 * HFp
                + 8 * HFp + 8 * TE) + (8 << 20)
    vmem = int(min(max(vmem, 16 << 20), 100 << 20))

    kernel = functools.partial(_gat_edge_kernel, NB=NB, TE=TE, HFp=HFp)
    grid_spec = pltpu.PrefetchScalarGridSpec(
        num_scalar_prefetch=3,
        grid=(nblocks, MAXC),
        in_specs=[
            pl.BlockSpec((N_pad, 2 * HFp), lambda nb, c, cb, nc, si: (0, 0)),  # gather slab
            pl.BlockSpec((NB, HFp), lambda nb, c, cb, nc, si: (nb, 0)),        # s_trg block
            pl.BlockSpec((NB, HFp), lambda nb, c, cb, nc, si: (nb, 0)),        # skip block
            pl.BlockSpec((1, HFp), lambda nb, c, cb, nc, si: (0, 0)),          # bias
            pl.BlockSpec((1, HFp), lambda nb, c, cb, nc, si: (0, 0)),          # global max row
            pl.BlockSpec((1, 1, TE),
                         lambda nb, c, cb, nc, si: (cb[nb] + jnp.minimum(c, nc[nb] - 1), 0, 0)),
            pl.BlockSpec((1, TE, 1),
                         lambda nb, c, cb, nc, si: (cb[nb] + jnp.minimum(c, nc[nb] - 1), 0, 0)),
        ],
        out_specs=pl.BlockSpec((NB, HFp), lambda nb, c, cb, nc, si: (nb, 0)),
        scratch_shapes=[pltpu.VMEM((TE, 2 * HFp), f32),     # src-row gather staging
                        pltpu.VMEM((NB, 2 * HFp), f32)],    # [numerator | denominator]
    )
    flops = 2 * C_total * TE * NB * 3 * HFp + 12 * C_total * TE * HFp
    out_pad = pl.pallas_call(
        kernel,
        out_shape=jax.ShapeDtypeStruct((N_pad, HFp), f32),
        grid_spec=grid_spec,
        compiler_params=pltpu.CompilerParams(
            dimension_semantics=("parallel", "arbitrary"),
            vmem_limit_bytes=vmem),
        cost_estimate=pl.CostEstimate(
            flops=int(flops),
            transcendentals=int(C_total * TE * HFp + N_pad * HFp),
            bytes_accessed=int(4 * (N_pad * 4 * HFp + C_total * TE * 3 + N_pad * HFp))),
    )(cb_j, nc_j, si_j, nodes_gather, strg_nodes, skip_nodes, bias_row, m_row, tlr_j, tlc_j)

    return out_pad[:N, :HF]


def gat_imp3_reference(x, edge_index, w_proj_t, w_skip_t, a_src, a_trg, bias):
    """Pure-JAX reference of GATLayerImp3.forward (eval mode, concat=True)."""
    N, Fin = x.shape
    H, Fout = a_src.shape
    proj = x @ w_proj_t
    proj3 = proj.reshape(N, H, Fout)
    s_src = (proj3 * a_src[None]).sum(-1)
    s_trg = (proj3 * a_trg[None]).sum(-1)
    src, trg = edge_index[0], edge_index[1]
    e = s_src[src] + s_trg[trg]
    e = jnp.where(e > 0, e, 0.2 * e)
    e = e - e.max()
    ex = jnp.exp(e)
    denom = jax.ops.segment_sum(ex, trg, num_segments=N)[trg]
    attn = ex / (denom + 1e-16)
    w = proj3[src] * attn[:, :, None]
    out = jax.ops.segment_sum(w.reshape(w.shape[0], -1), trg, num_segments=N)
    if Fout == Fin:
        out = out + jnp.tile(x, (1, H))
    else:
        out = out + x @ w_skip_t
    out = out + bias
    return jnp.where(out > 0, out, jnp.exp(jnp.minimum(out, 0.0)) - 1.0)


if __name__ == "__main__":
    # Small shapes consistent with the module: N nodes, E edges, Fin in-feats, H heads, Fout out-feats.
    N, E, Fin, H, Fout = 32, 64, 16, 4, 8
    HF = H * Fout

    key = jax.random.PRNGKey(0)
    k_x, k_e1, k_e2, k_wp, k_ws, k_as, k_at = jax.random.split(key, 7)

    x = jax.random.normal(k_x, (N, Fin), dtype=jnp.float32)
    src = jax.random.randint(k_e1, (E,), 0, N, dtype=jnp.int32)
    trg = jax.random.randint(k_e2, (E,), 0, N, dtype=jnp.int32)
    edge_index = jnp.stack([src, trg], axis=0)           # (2, E)

    # Deterministic xavier-uniform-style parameter init (shapes from __init__).
    b_proj = (6.0 / (Fin + HF)) ** 0.5
    w_proj_t = jax.random.uniform(k_wp, (Fin, HF), jnp.float32, -b_proj, b_proj)   # linear_proj.weight^T
    w_skip_t = jax.random.uniform(k_ws, (Fin, HF), jnp.float32, -b_proj, b_proj)   # skip_proj.weight^T
    b_score = (6.0 / (H * Fout + 1)) ** 0.5
    a_src = jax.random.uniform(k_as, (H, Fout), jnp.float32, -b_score, b_score)    # scoring_fn_source
    a_trg = jax.random.uniform(k_at, (H, Fout), jnp.float32, -b_score, b_score)    # scoring_fn_target
    bias = jnp.zeros((HF,), jnp.float32)                                           # init zeros, concat=True

    out = gat_imp3_forward(x, edge_index, w_proj_t, w_skip_t, a_src, a_trg, bias)
    out = jax.block_until_ready(out)

    ref = gat_imp3_reference(x, edge_index, w_proj_t, w_skip_t, a_src, a_trg, bias)
    assert out.shape == (N, HF)
    assert bool(jnp.all(jnp.isfinite(out)))
    err = float(jnp.max(jnp.abs(out - ref)))
    assert jnp.allclose(out, ref, rtol=1e-4, atol=1e-4), err
    print("KERNEL_OK")
</pallas_src>

<mosaic_0001>
module attributes {stable_mosaic.version = 11 : i64} {
  func.func @_node_proj_kernel(%arg0: i32, %arg1: memref<32x128xf32, #tpu.memory_space<vmem>>, %arg2: memref<128x512xf32, #tpu.memory_space<vmem>>, %arg3: memref<32x256xf32, #tpu.memory_space<vmem>>, %arg4: memref<32x128xf32, #tpu.memory_space<vmem>>, %arg5: memref<32x128xf32, #tpu.memory_space<vmem>>) attributes {dimension_semantics = [#tpu.dimension_semantics<parallel>], iteration_bounds = array<i64: 1>, scalar_prefetch = 0 : i64, scratch_operands = 0 : i64, tpu.core_type = #tpu.core_type<tc>, window_params = [{transform_indices = @transform_0, window_bounds = array<i64: 32, 128>}, {pipeline_mode = #tpu.pipeline_mode<synchronous>, transform_indices = @transform_1, window_bounds = array<i64: 128, 512>}, {transform_indices = @transform_2, window_bounds = array<i64: 32, 256>}, {transform_indices = @transform_3, window_bounds = array<i64: 32, 128>}, {transform_indices = @transform_4, window_bounds = array<i64: 32, 128>}]} {
    %c0 = arith.constant 0 : index
    %c0_0 = arith.constant 0 : index
    %0 = vector.load %arg1[%c0, %c0_0] : memref<32x128xf32, #tpu.memory_space<vmem>>, vector<32x128xf32>
    %c0_1 = arith.constant 0 : index
    %c0_2 = arith.constant 0 : index
    %1 = vector.load %arg2[%c0_1, %c0_2] : memref<128x512xf32, #tpu.memory_space<vmem>>, vector<128x512xf32>
    %cst = arith.constant dense<0.000000e+00> : vector<32x512xf32>
    %2 = tpu.matmul %0, %1, %cst {dimension_numbers = #tpu.dot_dimension_numbers<[1], [0], [0], [1], [0, 0, 1, 1], [], []>} : vector<32x128xf32>, vector<128x512xf32>, vector<32x512xf32> -> vector<32x512xf32>
    %3 = vector.extract_strided_slice %2 {offsets = [0, 0], sizes = [32, 256], strides = [1, 1]} : vector<32x512xf32> to vector<32x256xf32>
    %c0_3 = arith.constant 0 : index
    %c0_4 = arith.constant 0 : index
    %4 = vector.load %arg3[%c0_3, %c0_4] : memref<32x256xf32, #tpu.memory_space<vmem>>, vector<32x256xf32>
    tpu.vector_store %arg3[%c0_3, %c0_4], %3 {strides = array<i32>} : memref<32x256xf32, #tpu.memory_space<vmem>>, vector<32x256xf32>,
    %5 = vector.extract_strided_slice %2 {offsets = [0, 256], sizes = [32, 128], strides = [1, 1]} : vector<32x512xf32> to vector<32x128xf32>
    %c0_5 = arith.constant 0 : index
    %c0_6 = arith.constant 0 : index
    %6 = vector.load %arg4[%c0_5, %c0_6] : memref<32x128xf32, #tpu.memory_space<vmem>>, vector<32x128xf32>
    tpu.vector_store %arg4[%c0_5, %c0_6], %5 {strides = array<i32>} : memref<32x128xf32, #tpu.memory_space<vmem>>, vector<32x128xf32>,
    %7 = vector.extract_strided_slice %2 {offsets = [0, 384], sizes = [32, 128], strides = [1, 1]} : vector<32x512xf32> to vector<32x128xf32>
    %c0_7 = arith.constant 0 : index
    %c0_8 = arith.constant 0 : index
    %8 = vector.load %arg5[%c0_7, %c0_8] : memref<32x128xf32, #tpu.memory_space<vmem>>, vector<32x128xf32>
    tpu.vector_store %arg5[%c0_7, %c0_8], %7 {strides = array<i32>} : memref<32x128xf32, #tpu.memory_space<vmem>>, vector<32x128xf32>,
    return
  }
  func.func @transform_0(%arg0: i32) -> (i32, i32) {
    %c0_i32 = arith.constant 0 : i32
    %c0_i32_0 = arith.constant 0 : i32
    return %arg0, %c0_i32 : i32, i32
  }
  func.func @transform_1(%arg0: i32) -> (i32, i32) {
    %c0_i32 = arith.constant 0 : i32
    %c0_i32_0 = arith.constant 0 : i32
    %c0_i32_1 = arith.constant 0 : i32
    return %c0_i32, %c0_i32_0 : i32, i32
  }
  func.func @transform_2(%arg0: i32) -> (i32, i32) {
    %c0_i32 = arith.constant 0 : i32
    %c0_i32_0 = arith.constant 0 : i32
    return %arg0, %c0_i32 : i32, i32
  }
  func.func @transform_3(%arg0: i32) -> (i32, i32) {
    %c0_i32 = arith.constant 0 : i32
    %c0_i32_0 = arith.constant 0 : i32
    return %arg0, %c0_i32 : i32, i32
  }
  func.func @transform_4(%arg0: i32) -> (i32, i32) {
    %c0_i32 = arith.constant 0 : i32
    %c0_i32_0 = arith.constant 0 : i32
    return %arg0, %c0_i32 : i32, i32
  }
}

</mosaic_0001>

<llo_original>
// kernel: tpu_custom_call.1
$region0: #{tpu_custom_call.1}
  #allocation0 [shape = 'u32[]', space=smem, size = 0x4, offset = 0x4, fixed_abs, tag = 'smem constant byte address 0x4 - core index']
  #allocation1 [shape = 'u32[144,128]{1,0:T(1,128)}', space=vmem, size = 0x12000, scoped, tag = 'internal scratch']
  %s0 = inlined_call_operand.hbm [shape: f32[32,128], index: 0, kind: input, shape index: {}]
  %s1 = inlined_call_operand.hbm [shape: f32[128,512], index: 1, kind: input, shape index: {}]
  %s2 = inlined_call_operand.hbm [shape: f32[32,256], index: 2, kind: output, shape index: {0}]
  %s3 = inlined_call_operand.hbm [shape: f32[32,128], index: 3, kind: output, shape index: {1}]
  %s4 = inlined_call_operand.hbm [shape: f32[32,128], index: 4, kind: output, shape index: {2}]
  %5 = xla_tuple %s2, %s3, %s4
  %s6 = sld [smem:[#allocation0]]
  $region42: #{tpu_custom_call.1} parent=0
    _
  %s8 = ssub.s32 1, %s6
  %s9 = scalar_select 0, %s8, %s6
  $region1: #{tpu_custom_call.1} parent=0
    #allocation2 [shape = 'u8[16384]{0}', space=vmem, size = 0x4000, scoped, tag = 'input window, operand 0, single buffered']
    #allocation3 [shape = 's32[1]{0}', space=sflag, size = 0x4, scoped, tag = 'scoped memory for tpu_custom_call.1']
    #allocation4 [shape = 's32[1]{0}', space=sflag, size = 0x4, scoped, tag = 'scoped memory for tpu_custom_call.1']
    #allocation5 [shape = 'u8[262144]{0}', space=vmem, size = 0x40000, scoped, tag = 'input window, operand 1, single buffered']
    #allocation6 [shape = 's32[1]{0}', space=sflag, size = 0x4, scoped, tag = 'scoped memory for tpu_custom_call.1']
    #allocation7 [shape = 'u8[32768]{0}', space=vmem, size = 0x8000, scoped, tag = 'output window, operand 0, single buffered']
    #allocation8 [shape = 'u8[16384]{0}', space=vmem, size = 0x4000, scoped, tag = 'output window, operand 1, single buffered']
    #allocation9 [shape = 's32[1]{0}', space=sflag, size = 0x4, scoped, tag = 'scoped memory for tpu_custom_call.1']
    #allocation10 [shape = 'u8[16384]{0}', space=vmem, size = 0x4000, scoped, tag = 'output window, operand 2, single buffered']
    %10 = vsyncpa [#allocation3], 0
    %11 = vsyncpa [#allocation6], 0
    %12 = vsyncpa [#allocation4], 0
    %13 = vsyncpa [#allocation9], 0
    // Predicated region
    $region2: #{tpu_custom_call.1} parent=1 // pred_check
      _
    $region3: #{tpu_custom_call.1} parent=1 // pred_check_branch
      %15 = sbr.rel (0) target = $region5
    $region4: #{tpu_custom_call.1} parent=1 // pred_region
      %s17 = ssub.s32 512, 512
      %18 = vsyncadd [#allocation3], %s17
      %s19 = sshll.u32 [#allocation2], 4
      %s20 = int_to_ptr.vmem [resolvable:$true] %s19
      %25 = dma.hbm_to_vmem [thread:$0]  %s0, 512, %s20, [#allocation3], 128, 128, 8
    $region5: #{tpu_custom_call.1} parent=1 // pred_fallthru
      _
    // Predicated region
    $region6: #{tpu_custom_call.1} parent=1 // pred_check
      _
    $region7: #{tpu_custom_call.1} parent=1 // pred_check_branch
      %27 = sbr.rel (0) target = $region9
    $region8: #{tpu_custom_call.1} parent=1 // pred_region
      %s29 = ssub.s32 8192, 8192
      %30 = vsyncadd [#allocation6], %s29
      %s31 = sshll.u32 [#allocation5], 4
      %s32 = int_to_ptr.vmem [resolvable:$true] %s31
      %37 = dma.hbm_to_vmem [thread:$0]  %s1, 8192, %s32, [#allocation6], 512, 512, 32
    $region9: #{tpu_custom_call.1} parent=1 // pred_fallthru
      _
    // Predicated region
    $region10: #{tpu_custom_call.1} parent=1 // pred_check
      _
    $region11: #{tpu_custom_call.1} parent=1 // pred_check_branch
      %39 = sbr.rel (0) target = $region13
    $region12: #{tpu_custom_call.1} parent=1 // pred_region
      %40 = dma.done [#allocation3], 512
    $region13: #{tpu_custom_call.1} parent=1 // pred_fallthru
      _
    // Predicated region
    $region14: #{tpu_custom_call.1} parent=1 // pred_check
      _
    $region15: #{tpu_custom_call.1} parent=1 // pred_check_branch
      %42 = sbr.rel (0) target = $region17
    $region16: #{tpu_custom_call.1} parent=1 // pred_region
      %43 = dma.done [#allocation6], 8192
    $region17: #{tpu_custom_call.1} parent=1 // pred_fallthru
      _
    %v44 = vld [vmem:[#allocation2] sm:$0xff]
    %v45 = vld [vmem:[#allocation2 + $0x8] sm:$0xff]
    %v46 = vld [vmem:[#allocation2 + $0x10] sm:$0xff]
    %v47 = vld [vmem:[#allocation2 + $0x18] sm:$0xff]
    %v48 = vld [vmem:[#allocation5] sm:$0xff]
    %v49 = vld [vmem:[#allocation5 + $0x8] sm:$0xff]
    %v50 = vld [vmem:[#allocation5 + $0x10] sm:$0xff]
    %v51 = vld [vmem:[#allocation5 + $0x18] sm:$0xff]
    %v52 = vld [vmem:[#allocation5 + $0x20] sm:$0xff]
    %v53 = vld [vmem:[#allocation5 + $0x28] sm:$0xff]
    %v54 = vld [vmem:[#allocation5 + $0x30] sm:$0xff]
    %v55 = vld [vmem:[#allocation5 + $0x38] sm:$0xff]
    %v56 = vld [vmem:[#allocation5 + $0x40] sm:$0xff]
    %v57 = vld [vmem:[#allocation5 + $0x48] sm:$0xff]
    %v58 = vld [vmem:[#allocation5 + $0x50] sm:$0xff]
    %v59 = vld [vmem:[#allocation5 + $0x58] sm:$0xff]
    %v60 = vld [vmem:[#allocation5 + $0x60] sm:$0xff]
    %v61 = vld [vmem:[#allocation5 + $0x68] sm:$0xff]
    %v62 = vld [vmem:[#allocation5 + $0x70] sm:$0xff]
    %v63 = vld [vmem:[#allocation5 + $0x78] sm:$0xff]
    %v64 = vld [vmem:[#allocation5 + $0x80] sm:$0xff]
    %v65 = vld [vmem:[#allocation5 + $0x88] sm:$0xff]
    %v66 = vld [vmem:[#allocation5 + $0x90] sm:$0xff]
    %v67 = vld [vmem:[#allocation5 + $0x98] sm:$0xff]
    %v68 = vld [vmem:[#allocation5 + $0xa0] sm:$0xff]
    %v69 = vld [vmem:[#allocation5 + $0xa8] sm:$0xff]
    %v70 = vld [vmem:[#allocation5 + $0xb0] sm:$0xff]
    %v71 = vld [vmem:[#allocation5 + $0xb8] sm:$0xff]
    %v72 = vld [vmem:[#allocation5 + $0xc0] sm:$0xff]
    %v73 = vld [vmem:[#allocation5 + $0xc8] sm:$0xff]
    %v74 = vld [vmem:[#allocation5 + $0xd0] sm:$0xff]
    %v75 = vld [vmem:[#allocation5 + $0xd8] sm:$0xff]
    %v76 = vld [vmem:[#allocation5 + $0xe0] sm:$0xff]
    %v77 = vld [vmem:[#allocation5 + $0xe8] sm:$0xff]
    %v78 = vld [vmem:[#allocation5 + $0xf0] sm:$0xff]
    %v79 = vld [vmem:[#allocation5 + $0xf8] sm:$0xff]
    %v80 = vld [vmem:[#allocation5 + $0x100] sm:$0xff]
    %v81 = vld [vmem:[#allocation5 + $0x108] sm:$0xff]
    %v82 = vld [vmem:[#allocation5 + $0x110] sm:$0xff]
    %v83 = vld [vmem:[#allocation5 + $0x118] sm:$0xff]
    %v84 = vld [vmem:[#allocation5 + $0x120] sm:$0xff]
    %v85 = vld [vmem:[#allocation5 + $0x128] sm:$0xff]
    %v86 = vld [vmem:[#allocation5 + $0x130] sm:$0xff]
    %v87 = vld [vmem:[#allocation5 + $0x138] sm:$0xff]
    %v88 = vld [vmem:[#allocation5 + $0x140] sm:$0xff]
    %v89 = vld [vmem:[#allocation5 + $0x148] sm:$0xff]
    %v90 = vld [vmem:[#allocation5 + $0x150] sm:$0xff]
    %v91 = vld [vmem:[#allocation5 + $0x158] sm:$0xff]
    %v92 = vld [vmem:[#allocation5 + $0x160] sm:$0xff]
    %v93 = vld [vmem:[#allocation5 + $0x168] sm:$0xff]
    %v94 = vld [vmem:[#allocation5 + $0x170] sm:$0xff]
    %v95 = vld [vmem:[#allocation5 + $0x178] sm:$0xff]
    %v96 = vld [vmem:[#allocation5 + $0x180] sm:$0xff]
    %v97 = vld [vmem:[#allocation5 + $0x188] sm:$0xff]
    %v98 = vld [vmem:[#allocation5 + $0x190] sm:$0xff]
    %v99 = vld [vmem:[#allocation5 + $0x198] sm:$0xff]
    %v100 = vld [vmem:[#allocation5 + $0x1a0] sm:$0xff]
    %v101 = vld [vmem:[#allocation5 + $0x1a8] sm:$0xff]
    %v102 = vld [vmem:[#allocation5 + $0x1b0] sm:$0xff]
    %v103 = vld [vmem:[#allocation5 + $0x1b8] sm:$0xff]
    %v104 = vld [vmem:[#allocation5 + $0x1c0] sm:$0xff]
    %v105 = vld [vmem:[#allocation5 + $0x1c8] sm:$0xff]
    %v106 = vld [vmem:[#allocation5 + $0x1d0] sm:$0xff]
    %v107 = vld [vmem:[#allocation5 + $0x1d8] sm:$0xff]
    %v108 = vld [vmem:[#allocation5 + $0x1e0] sm:$0xff]
    %v109 = vld [vmem:[#allocation5 + $0x1e8] sm:$0xff]
    %v110 = vld [vmem:[#allocation5 + $0x1f0] sm:$0xff]
    %v111 = vld [vmem:[#allocation5 + $0x1f8] sm:$0xff]
    %112 = vmatprep.subr.mxu0 %v49
    %113 = vmatpush1.msra.mxu0 %v48
    %114 = vmatprep.subr.mxu0 %v53
    %115 = vmatpush1.msra.mxu0 %v52
    %116 = vmatprep.subr.mxu0 %v57
    %117 = vmatpush1.msra.mxu0 %v56
    %118 = vmatprep.subr.mxu0 %v61
    %119 = vmatpush1.msra.mxu0 %v60
    %120 = vmatprep.subr.mxu0 %v65
    %121 = vmatpush1.msra.mxu0 %v64
    %122 = vmatprep.subr.mxu0 %v69
    %123 = vmatpush1.msra.mxu0 %v68
    %124 = vmatprep.subr.mxu0 %v73
    %125 = vmatpush1.msra.mxu0 %v72
    %126 = vmatprep.subr.mxu0 %v77
    %127 = vmatpush1.msra.mxu0 %v76
    %128 = vmatprep.subr.mxu0 %v81
    %129 = vmatpush1.msra.mxu0 %v80
    %130 = vmatprep.subr.mxu0 %v85
    %131 = vmatpush1.msra.mxu0 %v84
    %132 = vmatprep.subr.mxu0 %v89
    %133 = vmatpush1.msra.mxu0 %v88
    %134 = vmatprep.subr.mxu0 %v93
    %135 = vmatpush1.msra.mxu0 %v92
    %136 = vmatprep.subr.mxu0 %v97
    %137 = vmatpush1.msra.mxu0 %v96
    %138 = vmatprep.subr.mxu0 %v101
    %139 = vmatpush1.msra.mxu0 %v100
    %140 = vmatprep.subr.mxu0 %v105
    %141 = vmatpush1.msra.mxu0 %v104
    %142 = vmatprep.subr.mxu0 %v109
    %143 = vmatpush1.msra.mxu0 %v108
    %144 = vmatprep.subr.mxu0 0.0
    %145 = vmatpush1.msra.mxu0 0.0
    %146 = vmatprep.subr.mxu0 0.0
    %147 = vmatpush1.msra.mxu0 0.0
    %148 = vmatprep.subr.mxu0 0.0
    %149 = vmatpush1.msra.mxu0 0.0
    %150 = vmatprep.subr.mxu0 0.0
    %151 = vmatpush1.msra.mxu0 0.0
    %152 = vmatprep.subr.mxu0 0.0
    %153 = vmatpush1.msra.mxu0 0.0
    %154 = vmatprep.subr.mxu0 0.0
    %155 = vmatpush1.msra.mxu0 0.0
    %156 = vmatprep.subr.mxu0 0.0
    %157 = vmatpush1.msra.mxu0 0.0
    %158 = vmatprep.subr.mxu0 0.0
    %159 = vmatpush1.msra.mxu0 0.0
    %160 = vmatprep.subr.mxu0 0.0
    %161 = vmatpush1.msra.mxu0 0.0
    %162 = vmatprep.subr.mxu0 0.0
    %163 = vmatpush1.msra.mxu0 0.0
    %164 = vmatprep.subr.mxu0 0.0
    %165 = vmatpush1.msra.mxu0 0.0
    %166 = vmatprep.subr.mxu0 0.0
    %167 = vmatpush1.msra.mxu0 0.0
    %168 = vmatprep.subr.mxu0 0.0
    %169 = vmatpush1.msra.mxu0 0.0
    %170 = vmatprep.subr.mxu0 0.0
    %171 = vmatpush1.msra.mxu0 0.0
    %172 = vmatprep.subr.mxu0 0.0
    %173 = vmatpush1.msra.mxu0 0.0
    %174 = vmatprep.subr.mxu0 0.0
    %175 = vmatpush1.msra.mxu0 0.0
    %176 = vmatprep.mubr.f32.mxu0 0.0
    %177 = vmatmul.mubr.f32.gmra.mrb[0].mxu0 %v44
    %v178 = vpop.f32.mrb[0].mxu0
    %v179 = vadd.f32 0.0, %v178
    %v180 = vpop.f32.mrb[0].mxu0
    %v181 = vadd.f32 0.0, %v180
    %182 = vmatprep.mubr.f32.mxu0 0.0
    %183 = vmatmul.mubr.f32.gmra.mrb[0].mxu0 %v45
    %v184 = vpop.f32.mrb[0].mxu0
    %v185 = vadd.f32 0.0, %v184
    %v186 = vpop.f32.mrb[0].mxu0
    %v187 = vadd.f32 0.0, %v186
    %188 = vmatprep.mubr.f32.mxu0 0.0
    %189 = vmatmul.mubr.f32.gmra.mrb[0].mxu0 %v46
    %v190 = vpop.f32.mrb[0].mxu0
    %v191 = vadd.f32 0.0, %v190
    %v192 = vpop.f32.mrb[0].mxu0
    %v193 = vadd.f32 0.0, %v192
    %194 = vmatprep.mubr.f32.mxu0 0.0
    %195 = vmatmul.mubr.f32.gmra.mrb[0].mxu0 %v47
    %v196 = vpop.f32.mrb[0].mxu0
    %v197 = vadd.f32 0.0, %v196
    %v198 = vpop.f32.mrb[0].mxu0
    %v199 = vadd.f32 0.0, %v198
    %200 = vdwg.mxu0
    %201 = vmatprep.subr.mxu0 %v51
    %202 = vmatpush1.msra.mxu0 %v50
    %203 = vmatprep.subr.mxu0 %v55
    %204 = vmatpush1.msra.mxu0 %v54
    %205 = vmatprep.subr.mxu0 %v59
    %206 = vmatpush1.msra.mxu0 %v58
    %207 = vmatprep.subr.mxu0 %v63
    %208 = vmatpush1.msra.mxu0 %v62
    %209 = vmatprep.subr.mxu0 %v67
    %210 = vmatpush1.msra.mxu0 %v66
    %211 = vmatprep.subr.mxu0 %v71
    %212 = vmatpush1.msra.mxu0 %v70
    %213 = vmatprep.subr.mxu0 %v75
    %214 = vmatpush1.msra.mxu0 %v74
    %215 = vmatprep.subr.mxu0 %v79
    %216 = vmatpush1.msra.mxu0 %v78
    %217 = vmatprep.subr.mxu0 %v83
    %218 = vmatpush1.msra.mxu0 %v82
    %219 = vmatprep.subr.mxu0 %v87
    %220 = vmatpush1.msra.mxu0 %v86
    %221 = vmatprep.subr.mxu0 %v91
    %222 = vmatpush1.msra.mxu0 %v90
    %223 = vmatprep.subr.mxu0 %v95
    %224 = vmatpush1.msra.mxu0 %v94
    %225 = vmatprep.subr.mxu0 %v99
    %226 = vmatpush1.msra.mxu0 %v98
    %227 = vmatprep.subr.mxu0 %v103
    %228 = vmatpush1.msra.mxu0 %v102
    %229 = vmatprep.subr.mxu0 %v107
    %230 = vmatpush1.msra.mxu0 %v106
    %231 = vmatprep.subr.mxu0 %v111
    %232 = vmatpush1.msra.mxu0 %v110
    %233 = vmatprep.subr.mxu0 0.0
    %234 = vmatpush1.msra.mxu0 0.0
    %235 = vmatprep.subr.mxu0 0.0
    %236 = vmatpush1.msra.mxu0 0.0
    %237 = vmatprep.subr.mxu0 0.0
    %238 = vmatpush1.msra.mxu0 0.0
    %239 = vmatprep.subr.mxu0 0.0
    %240 = vmatpush1.msra.mxu0 0.0
    %241 = vmatprep.subr.mxu0 0.0
    %242 = vmatpush1.msra.mxu0 0.0
    %243 = vmatprep.subr.mxu0 0.0
    %244 = vmatpush1.msra.mxu0 0.0
    %245 = vmatprep.subr.mxu0 0.0
    %246 = vmatpush1.msra.mxu0 0.0
    %247 = vmatprep.subr.mxu0 0.0
    %248 = vmatpush1.msra.mxu0 0.0
    %249 = vmatprep.subr.mxu0 0.0
    %250 = vmatpush1.msra.mxu0 0.0
    %251 = vmatprep.subr.mxu0 0.0
    %252 = vmatpush1.msra.mxu0 0.0
    %253 = vmatprep.subr.mxu0 0.0
    %254 = vmatpush1.msra.mxu0 0.0
    %255 = vmatprep.subr.mxu0 0.0
    %256 = vmatpush1.msra.mxu0 0.0
    %257 = vmatprep.subr.mxu0 0.0
    %258 = vmatpush1.msra.mxu0 0.0
    %259 = vmatprep.subr.mxu0 0.0
    %260 = vmatpush1.msra.mxu0 0.0
    %261 = vmatprep.subr.mxu0 0.0
    %262 = vmatpush1.msra.mxu0 0.0
    %263 = vmatprep.subr.mxu0 0.0
    %264 = vmatpush1.msra.mxu0 0.0
    %265 = vmatprep.mubr.f32.mxu0 0.0
    %266 = vmatmul.mubr.f32.gmra.mrb[0].mxu0 %v44
    %v267 = vpop.f32.mrb[0].mxu0
    %v268 = vadd.f32 0.0, %v267
    %v269 = vpop.f32.mrb[0].mxu0
    %v270 = vadd.f32 0.0, %v269
    %271 = vmatprep.mubr.f32.mxu0 0.0
    %272 = vmatmul.mubr.f32.gmra.mrb[0].mxu0 %v45
    %v273 = vpop.f32.mrb[0].mxu0
    %v274 = vadd.f32 0.0, %v273
    %v275 = vpop.f32.mrb[0].mxu0
    %v276 = vadd.f32 0.0, %v275
    %277 = vmatprep.mubr.f32.mxu0 0.0
    %278 = vmatmul.mubr.f32.gmra.mrb[0].mxu0 %v46
    %v279 = vpop.f32.mrb[0].mxu0
    %v280 = vadd.f32 0.0, %v279
    %v281 = vpop.f32.mrb[0].mxu0
    %v282 = vadd.f32 0.0, %v281
    %283 = vmatprep.mubr.f32.mxu0 0.0
    %284 = vmatmul.mubr.f32.gmra.mrb[0].mxu0 %v47
    %v285 = vpop.f32.mrb[0].mxu0
    %v286 = vadd.f32 0.0, %v285
    %v287 = vpop.f32.mrb[0].mxu0
    %v288 = vadd.f32 0.0, %v287
    %289 = vdwg.mxu0
    %290 = vst [vmem:[#allocation7] sm:$0xff] %v179
    %291 = vst [vmem:[#allocation7 + $0x8] sm:$0xff] %v181
    %292 = vst [vmem:[#allocation7 + $0x10] sm:$0xff] %v185
    %293 = vst [vmem:[#allocation7 + $0x18] sm:$0xff] %v187
    %294 = vst [vmem:[#allocation7 + $0x20] sm:$0xff] %v191
    %295 = vst [vmem:[#allocation7 + $0x28] sm:$0xff] %v193
    %296 = vst [vmem:[#allocation7 + $0x30] sm:$0xff] %v197
    %297 = vst [vmem:[#allocation7 + $0x38] sm:$0xff] %v199
    %298 = vst [vmem:[#allocation8] sm:$0xff] %v268
    %299 = vst [vmem:[#allocation8 + $0x8] sm:$0xff] %v274
    %300 = vst [vmem:[#allocation8 + $0x10] sm:$0xff] %v280
    %301 = vst [vmem:[#allocation8 + $0x18] sm:$0xff] %v286
    %302 = vst [vmem:[#allocation10] sm:$0xff] %v270
    %303 = vst [vmem:[#allocation10 + $0x8] sm:$0xff] %v276
    %304 = vst [vmem:[#allocation10 + $0x10] sm:$0xff] %v282
    %305 = vst [vmem:[#allocation10 + $0x18] sm:$0xff] %v288
    // Predicated region
    $region18: #{tpu_custom_call.1} parent=1 // pred_check
      _
    $region19: #{tpu_custom_call.1} parent=1 // pred_check_branch
      %307 = sbr.rel (0) target = $region21
    $region20: #{tpu_custom_call.1} parent=1 // pred_region
      %s309 = ssub.s32 1024, 1024
      %310 = vsyncadd [#allocation4], %s309
      %s311 = sshll.u32 [#allocation7], 4
      %s312 = int_to_ptr.vmem [resolvable:$true] %s311
      %317 = dma.vmem_to_hbm [thread:$0]  %s312, 1024, %s2, [#allocation4], 256, 256, 16
    $region21: #{tpu_custom_call.1} parent=1 // pred_fallthru
      _
    // Predicated region
    $region22: #{tpu_custom_call.1} parent=1 // pred_check
      _
    $region23: #{tpu_custom_call.1} parent=1 // pred_check_branch
      %319 = sbr.rel (0) target = $region25
    $region24: #{tpu_custom_call.1} parent=1 // pred_region
      %s321 = ssub.s32 512, 512
      %322 = vsyncadd [#allocation9], %s321
      %s323 = sshll.u32 [#allocation8], 4
      %s324 = int_to_ptr.vmem [resolvable:$true] %s323
      %329 = dma.vmem_to_hbm [thread:$0]  %s324, 512, %s3, [#allocation9], 128, 128, 8
    $region25: #{tpu_custom_call.1} parent=1 // pred_fallthru
      _
    // Predicated region
    $region26: #{tpu_custom_call.1} parent=1 // pred_check
      _
    $region27: #{tpu_custom_call.1} parent=1 // pred_check_branch
      %331 = sbr.rel (0) target = $region29
    $region28: #{tpu_custom_call.1} parent=1 // pred_region
      %s333 = ssub.s32 512, 512
      %334 = vsyncadd [#allocation9], %s333
      %s335 = sshll.u32 [#allocation10], 4
      %s336 = int_to_ptr.vmem [resolvable:$true] %s335
      %341 = dma.vmem_to_hbm [thread:$0]  %s336, 512, %s4, [#allocation9], 128, 128, 8
    $region29: #{tpu_custom_call.1} parent=1 // pred_fallthru
      _
    // Predicated region
    $region30: #{tpu_custom_call.1} parent=1 // pred_check
      _
    $region31: #{tpu_custom_call.1} parent=1 // pred_check_branch
      %343 = sbr.rel (0) target = $region33
    $region32: #{tpu_custom_call.1} parent=1 // pred_region
      %344 = dma.done [#allocation4], 1024
    $region33: #{tpu_custom_call.1} parent=1 // pred_fallthru
      _
    // Predicated region
    $region34: #{tpu_custom_call.1} parent=1 // pred_check
      _
    $region35: #{tpu_custom_call.1} parent=1 // pred_check_branch
      %346 = sbr.rel (0) target = $region37
    $region36: #{tpu_custom_call.1} parent=1 // pred_region
      %347 = dma.done [#allocation9], 512
    $region37: #{tpu_custom_call.1} parent=1 // pred_fallthru
      _
    // Predicated region
    $region38: #{tpu_custom_call.1} parent=1 // pred_check
      _
    $region39: #{tpu_custom_call.1} parent=1 // pred_check_branch
      %349 = sbr.rel (0) target = $region41
    $region40: #{tpu_custom_call.1} parent=1 // pred_region
      %350 = dma.done [#allocation9], 512
    $region41: #{tpu_custom_call.1} parent=1 // pred_fallthru
      _
    %351 = vsyncpa [#allocation3], 1
    %352 = vsyncpa [#allocation6], 1
    %353 = vsyncpa [#allocation4], 1
    %354 = vsyncpa [#allocation9], 1

</llo_original>
